<compile_context>
chip_gen: v5e
topology: v5e:2x2
jax: 0.10.0
libtpu: 0.0.40
codegen_flags: <defaults>
</compile_context>

<pallas_src>
import jax
import jax.numpy as jnp
from jax.experimental import pallas as pl
from jax.experimental.pallas import tpu as pltpu


def _projection_kernel(x_ref, w_ref, b_ref, o_ref):
    # x_ref: (tile_n, K) patch rows; w_ref: (K, tile_e) pre-transposed weight;
    # b_ref: (1, tile_e) f32 bias; o_ref: (tile_n, tile_e).
    acc = jnp.dot(x_ref[...], w_ref[...], preferred_element_type=jnp.float32)
    o_ref[...] = (acc + b_ref[...]).astype(o_ref.dtype)


def _round_up(v, m):
    return ((v + m - 1) // m) * m


def _choose_tiles(N, K, E_pad, in_itemsize, out_itemsize, tile_n_req, sublane_mult):
    """Shape-derived tile sizes that fit v7x's 64 MiB/TC VMEM."""
    budget = 40 * 1024 * 1024  # double-buffered working-set budget (v7x headroom)

    # E tiling: keep the whole weight resident unless its VMEM footprint is
    # large; then take the largest 128-multiple divisor of E_pad <= 1024.
    if K * E_pad * in_itemsize <= 16 * 1024 * 1024:
        tile_e = E_pad
    else:
        tile_e = max(m for m in range(128, min(E_pad, 1024) + 1, 128)
                     if E_pad % m == 0)

    # N tiling: honor the request, force a sublane multiple, never exceed N.
    tile_n = max(sublane_mult,
                 min(_round_up(tile_n_req, sublane_mult), _round_up(N, sublane_mult)))

    def need(tn, te):
        return (2 * tn * K * in_itemsize        # x blocks (double-buffered)
                + 2 * K * te * in_itemsize      # weight blocks
                + 2 * te * 4                    # bias blocks
                + 2 * tn * te * out_itemsize)   # output blocks

    while tile_n > sublane_mult and need(tile_n, tile_e) > budget:
        tile_n = max(sublane_mult, _round_up(tile_n // 2, sublane_mult))

    # v7x megacore: make sure the parallel grid has >= 2 steps when possible.
    if pl.cdiv(N, tile_n) * pl.cdiv(E_pad, tile_e) < 2 and N > sublane_mult:
        tile_n = _round_up(pl.cdiv(N, 2), sublane_mult)

    return tile_n, tile_e, need(tile_n, tile_e)


def make_custom_patch_embedding(input_size, patch_size, num_patches, embed_dim,
                                weight, bias, *, tile_n=512,
                                compute_dtype=None, out_dtype=None):
    """Build a jitted forward for the 'grid' approach.

    Weight/bias prep (transpose, cast, lane-pad) happens ONCE here, not per call.
    compute_dtype=jnp.bfloat16 halves input/weight HBM traffic (f32 MXU
    accumulation and f32 bias add are kept); default keeps the module's f32.
    """
    C, H, W = input_size
    ph, pw = patch_size
    gh, gw = H // ph, W // pw
    assert gh * gw == num_patches, \
        "grid approach: num_patches must be (H//ph)*(W//pw)"
    K = C * ph * pw
    E = embed_dim
    assert weight.shape == (E, K)

    compute_dtype = jnp.dtype(compute_dtype or weight.dtype)
    out_dtype = jnp.dtype(out_dtype or weight.dtype)
    in_itemsize = compute_dtype.itemsize
    out_itemsize = out_dtype.itemsize
    if min(in_itemsize, out_itemsize) == 1:
        sublane_mult = 32
    elif min(in_itemsize, out_itemsize) == 2:
        sublane_mult = 16
    else:
        sublane_mult = 8

    # Lane-dense output only when needed: E % 128 == 0 -> no padding, no slice.
    E_pad = E if E % 128 == 0 else _round_up(max(E, 128), 128)

    # Hoisted once per weight: transpose, cast, lane-pad. Padded weight columns
    # and bias lanes are zero, so any padded output lanes are exact zeros.
    w_t = jnp.zeros((K, E_pad), compute_dtype).at[:, :E].set(
        weight.T.astype(compute_dtype))
    b2 = jnp.zeros((1, E_pad), jnp.float32).at[:, :E].set(bias.astype(jnp.float32))

    def forward(x):
        B = x.shape[0]
        N = B * num_patches

        tn, te, vmem_need = _choose_tiles(N, K, E_pad, in_itemsize,
                                          out_itemsize, tile_n, sublane_mult)
        grid = (pl.cdiv(N, tn), pl.cdiv(E_pad, te))
        vmem_limit = min(max(vmem_need + (4 << 20), 32 << 20), 60 << 20)

        # Grid patch extraction + channel-major flatten. Cast first (half-size
        # intermediate in bf16); allow_input_fusion lets XLA fold this relayout
        # into the kernel's input DMA instead of an HBM round-trip.
        patches = x.astype(compute_dtype)
        patches = patches.reshape(B, C, gh, ph, gw, pw)
        patches = patches.transpose(0, 2, 4, 1, 3, 5)          # (B, gh, gw, C, ph, pw)
        patches = patches.reshape(N, K)

        cost = pl.CostEstimate(
            flops=2 * N * K * E,
            transcendentals=0,
            bytes_accessed=(N * K * in_itemsize + K * E * in_itemsize
                            + N * E * out_itemsize + E * 4),
        )

        out = pl.pallas_call(
            _projection_kernel,
            out_shape=jax.ShapeDtypeStruct((N, E_pad), out_dtype),
            grid=grid,
            in_specs=[
                pl.BlockSpec((tn, K), lambda i, j: (i, 0)),   # streamed patch rows
                pl.BlockSpec((K, te), lambda i, j: (0, j)),   # weight (VMEM-resident per j)
                pl.BlockSpec((1, te), lambda i, j: (0, j)),   # bias
            ],
            out_specs=pl.BlockSpec((tn, te), lambda i, j: (i, j)),
            compiler_params=pltpu.CompilerParams(
                dimension_semantics=("parallel", "parallel"),
                vmem_limit_bytes=vmem_limit,
                allow_input_fusion=[True, False, False],
            ),
            cost_estimate=cost,
        )(patches, w_t, b2)

        if E_pad != E:
            out = out[:, :E]
        return out.reshape(B, num_patches, E)

    return jax.jit(forward)


def _reference(x, weight, bias, ph, pw):
    B, C, H, W = x.shape
    gh, gw = H // ph, W // pw
    p = x.reshape(B, C, gh, ph, gw, pw).transpose(0, 2, 4, 1, 3, 5)
    p = p.reshape(B, gh * gw, C * ph * pw)
    return jnp.einsum("bpk,ek->bpe", p, weight) + bias


if __name__ == "__main__":
    # Shapes consistent with the module: input_size = (C, H, W) = (4, 16, 16),
    # patch_size = (4, 4), num_patches = 16, embed_dim = 32.
    B, C, H, W = 2, 4, 16, 16
    patch_size = (4, 4)
    num_patches = (H // patch_size[0]) * (W // patch_size[1])   # 16
    embed_dim = 32
    patch_dim = C * patch_size[0] * patch_size[1]               # 64

    key = jax.random.PRNGKey(0)
    kx, kw, kb, k2x, k2w, k2b = jax.random.split(key, 6)
    x = jax.random.normal(kx, (B, C, H, W), dtype=jnp.float32)
    # Deterministic nn.Linear-style init (uniform in +-1/sqrt(fan_in)).
    bound = 1.0 / (patch_dim ** 0.5)
    weight = jax.random.uniform(kw, (embed_dim, patch_dim), jnp.float32, -bound, bound)
    bias = jax.random.uniform(kb, (embed_dim,), jnp.float32, -bound, bound)

    embed = make_custom_patch_embedding((C, H, W), patch_size, num_patches,
                                        embed_dim, weight, bias)
    out = jax.block_until_ready(embed(x))
    ref = _reference(x, weight, bias, *patch_size)
    assert out.shape == (B, num_patches, embed_dim)
    assert jnp.allclose(out, ref, atol=1e-5, rtol=1e-5)

    # bf16-operand path (f32 MXU accumulation) — looser tolerance for the cast.
    embed_bf16 = make_custom_patch_embedding((C, H, W), patch_size, num_patches,
                                             embed_dim, weight, bias,
                                             compute_dtype=jnp.bfloat16)
    out_bf16 = jax.block_until_ready(embed_bf16(x))
    assert out_bf16.shape == (B, num_patches, embed_dim)
    assert jnp.allclose(out_bf16, ref, atol=1e-1, rtol=1e-1)

    # Second config exercising E % 128 == 0 (no lane pad / no post-slice) and a
    # non-divisible N (partial last block masked by Pallas): 20x20 image,
    # 25 patches per image -> N = 50.
    C2, H2, W2, E2 = 4, 20, 20, 128
    np2 = (H2 // 4) * (W2 // 4)                                 # 25
    bound2 = 1.0 / ((C2 * 16) ** 0.5)
    x2 = jax.random.normal(k2x, (2, C2, H2, W2), jnp.float32)
    w2 = jax.random.uniform(k2w, (E2, C2 * 16), jnp.float32, -bound2, bound2)
    b2v = jax.random.uniform(k2b, (E2,), jnp.float32, -bound2, bound2)
    embed2 = make_custom_patch_embedding((C2, H2, W2), (4, 4), np2, E2, w2, b2v)
    out2 = jax.block_until_ready(embed2(x2))
    ref2 = _reference(x2, w2, b2v, 4, 4)
    assert out2.shape == (2, np2, E2)
    assert jnp.allclose(out2, ref2, atol=1e-5, rtol=1e-5)

    print("KERNEL_OK")
</pallas_src>

<mosaic_0001>
module attributes {stable_mosaic.version = 11 : i64} {
  func.func @_projection_kernel(%arg0: i32, %arg1: i32, %arg2: memref<16x64xf32, #tpu.memory_space<vmem>>, %arg3: memref<64x128xf32, #tpu.memory_space<vmem>>, %arg4: memref<1x128xf32, #tpu.memory_space<vmem>>, %arg5: memref<16x128xf32, #tpu.memory_space<vmem>>) attributes {dimension_semantics = [#tpu.dimension_semantics<parallel>, #tpu.dimension_semantics<parallel>], iteration_bounds = array<i64: 2, 1>, scalar_prefetch = 0 : i64, scratch_operands = 0 : i64, tpu.core_type = #tpu.core_type<tc>, window_params = [{transform_indices = @transform_0, window_bounds = array<i64: 16, 64>}, {transform_indices = @transform_1, window_bounds = array<i64: 64, 128>}, {transform_indices = @transform_2, window_bounds = array<i64: 1, 128>}, {transform_indices = @transform_3, window_bounds = array<i64: 16, 128>}]} {
    %c0 = arith.constant 0 : index
    %c0_0 = arith.constant 0 : index
    %0 = vector.load %arg2[%c0, %c0_0] : memref<16x64xf32, #tpu.memory_space<vmem>>, vector<16x64xf32>
    %c0_1 = arith.constant 0 : index
    %c0_2 = arith.constant 0 : index
    %1 = vector.load %arg3[%c0_1, %c0_2] : memref<64x128xf32, #tpu.memory_space<vmem>>, vector<64x128xf32>
    %cst = arith.constant dense<0.000000e+00> : vector<16x128xf32>
    %2 = tpu.matmul %0, %1, %cst {dimension_numbers = #tpu.dot_dimension_numbers<[1], [0], [0], [1], [0, 0, 1, 1], [], []>} : vector<16x64xf32>, vector<64x128xf32>, vector<16x128xf32> -> vector<16x128xf32>
    %c0_3 = arith.constant 0 : index
    %c0_4 = arith.constant 0 : index
    %3 = vector.load %arg4[%c0_3, %c0_4] : memref<1x128xf32, #tpu.memory_space<vmem>>, vector<1x128xf32>
    %4 = vector.broadcast %3 : vector<1x128xf32> to vector<16x128xf32>
    %5 = arith.addf %2, %4 : vector<16x128xf32>
    %c0_5 = arith.constant 0 : index
    %c0_6 = arith.constant 0 : index
    %6 = vector.load %arg5[%c0_5, %c0_6] : memref<16x128xf32, #tpu.memory_space<vmem>>, vector<16x128xf32>
    tpu.vector_store %arg5[%c0_5, %c0_6], %5 {strides = array<i32>} : memref<16x128xf32, #tpu.memory_space<vmem>>, vector<16x128xf32>,
    return
  }
  func.func @transform_0(%arg0: i32, %arg1: i32) -> (i32, i32) {
    %c0_i32 = arith.constant 0 : i32
    %c0_i32_0 = arith.constant 0 : i32
    return %arg0, %c0_i32 : i32, i32
  }
  func.func @transform_1(%arg0: i32, %arg1: i32) -> (i32, i32) {
    %c0_i32 = arith.constant 0 : i32
    %c0_i32_0 = arith.constant 0 : i32
    return %c0_i32, %arg1 : i32, i32
  }
  func.func @transform_2(%arg0: i32, %arg1: i32) -> (i32, i32) {
    %c0_i32 = arith.constant 0 : i32
    %c0_i32_0 = arith.constant 0 : i32
    return %c0_i32, %arg1 : i32, i32
  }
  func.func @transform_3(%arg0: i32, %arg1: i32) -> (i32, i32) {
    %c0_i32 = arith.constant 0 : i32
    return %arg0, %arg1 : i32, i32
  }
}

</mosaic_0001>

<llo_original>
// kernel: forward.1
$region0: #{forward.1}
  #allocation0 [shape = 'u32[]', space=smem, size = 0x4, offset = 0x4, fixed_abs, tag = 'smem constant byte address 0x4 - core index']
  #allocation1 [shape = 'u32[72,128]{1,0:T(1,128)}', space=vmem, size = 0x9000, scoped, tag = 'internal scratch']
  %s0 = inlined_call_operand.vmem [shape: f32[32,64], index: 0, kind: input, shape index: {}]
  %s1 = inlined_call_operand.vmem [shape: f32[64,128], index: 1, kind: input, shape index: {}]
  %s2 = inlined_call_operand.vmem [shape: f32[1,128], index: 2, kind: input, shape index: {}]
  %s3 = inlined_call_operand.hbm [shape: f32[32,128], index: 3, kind: output, shape index: {}]
  %s4 = sld [smem:[#allocation0]]
  $region45: #{forward.1} parent=0
    _
  %s6 = ssub.s32 1, %s4
  %s7 = scalar_select 0, %s6, %s4
  $region1: #{forward.1} parent=0
    #allocation2 [shape = 'u8[16384]{0}', space=vmem, size = 0x4000, scoped, tag = 'output window, operand 0']
    #allocation3 [shape = 's32[2]{0}', space=sflag, size = 0x8, scoped, tag = 'scoped memory for forward.1']
    %8 = vsyncpa [#allocation3], 0
    %s9 = scalar_lea.sflag [#allocation3], 1
    %10 = vsyncpa %s9, 0
    loop: start=0, step=1, limit=4
    $region2: #{forward.1} parent=1 // loop_pre_header
      _
    $region3: #{forward.1} parent=1 // loop_header
      %s12 = sphi 0, %s16
      %p13 = scmp.ge.s32.totalorder %s12, 4
      %s19 = sphi 0, %s31
      %s20 = sphi 0, %s27
      %s21 = sphi 0, %s19
      %s22 = sphi 0, %s20
      %s23 = sphi 0, %s21
      %s24 = sphi 0, %s22
      %s34 = sphi 0, %s36
      %s37 = sphi 0, %s34
      %s38 = sphi 0, %s37
      %s54 = sphi 0, %s38
      %s60 = sphi 0, %s62
      %s63 = sphi 0, %s60
      %s64 = sphi 0, %s63
      %s80 = sphi 0, %s64
      %s86 = sphi 0, %s88
      %s89 = sphi 0, %s86
      %s90 = sphi 0, %s89
      %s106 = sphi 0, %s90
      %s114 = sphi 0, %s116
      %s117 = sphi 0, %s114
      %s118 = sphi 0, %s117
      %s134 = sphi 0, %s118
    $region4: #{forward.1} parent=1 // loop_header_branch
      %15 = sbr.rel (%p13) target = $region8
    $region5: #{forward.1} parent=1 // loop_body
      %s17 = ssub.s32 %s12, 1
      %s18 = ssub.s32 %s12, 2
      %s25 = sadd.s32 1, %s20
      %p26 = scmp.ge.s32.totalorder %s25, 1
      %s27 = scalar_select %p26, 0, %s25
      %s28 = sadd.s32 1, %s19
      %s29 = scalar_select %p26, %s28, %s19
      %p30 = scmp.ge.s32.totalorder %s29, 2
      %s31 = scalar_select %p30, 0, %s29
      %s32 = ssub.s32 %s19, %s31
      %p33 = scmp.eq.s32.totalorder %s32, 0
      %s35 = sadd.s32 %s34, 1
      %s36 = scalar_select %p33, %s34, %s35
      %p39 = pneg %p33
      %p40 = scmp.eq.s32.totalorder %s12, 1
      %p41 = por %p39, %p40
      %p42 = scmp.ne.s32.totalorder %s34, %s37
      %p43 = scmp.eq.s32.totalorder %s12, 0
      %p44 = por %p42, %p43
      %p45 = scmp.ne.s32.totalorder %s34, %s37
      %p46 = scmp.eq.s32.totalorder %s17, 1
      %p47 = por %p45, %p46
      %p48 = scmp.ne.s32.totalorder %s37, %s38
      %p49 = scmp.eq.s32.totalorder %s17, 0
      %p50 = por %p48, %p49
      %p51 = scmp.ne.s32.totalorder %s37, %s38
      %p52 = scmp.eq.s32.totalorder %s18, 1
      %p53 = por %p51, %p52
      %p55 = scmp.ne.s32.totalorder %s38, %s54
      %p56 = scmp.eq.s32.totalorder %s18, 0
      %p57 = por %p55, %p56
      %s58 = ssub.s32 %s20, %s27
      %p59 = scmp.eq.s32.totalorder %s58, 0
      %s61 = sadd.s32 %s60, 1
      %s62 = scalar_select %p59, %s60, %s61
      %p65 = pneg %p59
      %p66 = scmp.eq.s32.totalorder %s12, 1
      %p67 = por %p65, %p66
      %p68 = scmp.ne.s32.totalorder %s60, %s63
      %p69 = scmp.eq.s32.totalorder %s12, 0
      %p70 = por %p68, %p69
      %p71 = scmp.ne.s32.totalorder %s60, %s63
      %p72 = scmp.eq.s32.totalorder %s17, 1
      %p73 = por %p71, %p72
      %p74 = scmp.ne.s32.totalorder %s63, %s64
      %p75 = scmp.eq.s32.totalorder %s17, 0
      %p76 = por %p74, %p75
      %p77 = scmp.ne.s32.totalorder %s63, %s64
      %p78 = scmp.eq.s32.totalorder %s18, 1
      %p79 = por %p77, %p78
      %p81 = scmp.ne.s32.totalorder %s64, %s80
      %p82 = scmp.eq.s32.totalorder %s18, 0
      %p83 = por %p81, %p82
      %s84 = ssub.s32 %s20, %s27
      %p85 = scmp.eq.s32.totalorder %s84, 0
      %s87 = sadd.s32 %s86, 1
      %s88 = scalar_select %p85, %s86, %s87
      %p91 = pneg %p85
      %p92 = scmp.eq.s32.totalorder %s12, 1
      %p93 = por %p91, %p92
      %p94 = scmp.ne.s32.totalorder %s86, %s89
      %p95 = scmp.eq.s32.totalorder %s12, 0
      %p96 = por %p94, %p95
      %p97 = scmp.ne.s32.totalorder %s86, %s89
      %p98 = scmp.eq.s32.totalorder %s17, 1
      %p99 = por %p97, %p98
      %p100 = scmp.ne.s32.totalorder %s89, %s90
      %p101 = scmp.eq.s32.totalorder %s17, 0
      %p102 = por %p100, %p101
      %p103 = scmp.ne.s32.totalorder %s89, %s90
      %p104 = scmp.eq.s32.totalorder %s18, 1
      %p105 = por %p103, %p104
      %p107 = scmp.ne.s32.totalorder %s90, %s106
      %p108 = scmp.eq.s32.totalorder %s18, 0
      %p109 = por %p107, %p108
      %s110 = ssub.s32 %s19, %s31
      %s111 = ssub.s32 %s20, %s27
      %s112 = sor.u32 %s110, %s111
      %p113 = scmp.eq.s32.totalorder %s112, 0
      %s115 = sadd.s32 %s114, 1
      %s116 = scalar_select %p113, %s114, %s115
      %p119 = pneg %p113
      %p120 = scmp.eq.s32.totalorder %s12, 1
      %p121 = por %p119, %p120
      %p122 = scmp.ne.s32.totalorder %s114, %s117
      %p123 = scmp.eq.s32.totalorder %s12, 0
      %p124 = por %p122, %p123
      %p125 = scmp.ne.s32.totalorder %s114, %s117
      %p126 = scmp.eq.s32.totalorder %s17, 1
      %p127 = por %p125, %p126
      %p128 = scmp.ne.s32.totalorder %s117, %s118
      %p129 = scmp.eq.s32.totalorder %s17, 0
      %p130 = por %p128, %p129
      %p131 = scmp.ne.s32.totalorder %s117, %s118
      %p132 = scmp.eq.s32.totalorder %s18, 1
      %p133 = por %p131, %p132
      %p135 = scmp.ne.s32.totalorder %s118, %s134
      %p136 = scmp.eq.s32.totalorder %s18, 0
      %p137 = por %p135, %p136
      %p138 = scmp.le.s32.totalorder 1, %s12
      %p139 = scmp.lt.s32.totalorder %s12, 3
      %p140 = pnand %p138, %p139
      %p141 = pneg %p140
      // Predicated region
      $region9: #{forward.1} parent=5 // pred_check
        _
      $region10: #{forward.1} parent=5 // pred_check_branch
        %143 = sbr.rel (%p140) target = $region12
      $region11: #{forward.1} parent=5 // pred_region
        %s144 = ssub.s32 %s12, 1
        // Predicated region
        $region13: #{forward.1} parent=11 // pred_check
          %p145 = pneg %p76
        $region14: #{forward.1} parent=11 // pred_check_branch
          %147 = sbr.rel (%p145) target = $region16
        $region15: #{forward.1} parent=11 // pred_region
          %p148 = scmp.lt.s32.totalorder %s22, 0
          %s149 = scalar_select %p148, %s22, 0
          %s150 = smul.addr %s149, 8
          %s151 = scalar_lea.vmem %s1, %s150
        $region16: #{forward.1} parent=11 // pred_fallthru
          _
        // Predicated region
        $region17: #{forward.1} parent=11 // pred_check
          %p152 = pneg %p102
        $region18: #{forward.1} parent=11 // pred_check_branch
          %154 = sbr.rel (%p152) target = $region20
        $region19: #{forward.1} parent=11 // pred_region
          %p155 = scmp.lt.s32.totalorder %s22, 0
          %s156 = scalar_select %p155, %s22, 0
          %s157 = scalar_lea.vmem %s2, %s156
        $region20: #{forward.1} parent=11 // pred_fallthru
          _
      $region12: #{forward.1} parent=5 // pred_fallthru
        _
      %p158 = scmp.lt.s32.totalorder %s12, 2
      // Predicated region
      $region21: #{forward.1} parent=5 // pred_check
        %p159 = pneg %p158
      $region22: #{forward.1} parent=5 // pred_check_branch
        %161 = sbr.rel (%p159) target = $region24
      $region23: #{forward.1} parent=5 // pred_region
        // Predicated region
        $region25: #{forward.1} parent=23 // pred_check
          %p162 = pneg %p44
        $region26: #{forward.1} parent=23 // pred_check_branch
          %164 = sbr.rel (%p162) target = $region28
        $region27: #{forward.1} parent=23 // pred_region
          %s165 = smul.u32 2, %s19
          %p166 = scmp.lt.s32.totalorder %s165, 3
          %s167 = scalar_select %p166, %s165, 3
          %s168 = smul.addr %s167, 8
          %s169 = scalar_lea.vmem %s0, %s168
          %s170 = smul.u32 2, %s19
        $region28: #{forward.1} parent=23 // pred_fallthru
          _
      $region24: #{forward.1} parent=5 // pred_fallthru
        _
      %p171 = scmp.le.s32.totalorder 1, %s12
      %p172 = scmp.lt.s32.totalorder %s12, 3
      %p173 = pnand %p171, %p172
      %p174 = pneg %p173
      // Predicated region
      $region29: #{forward.1} parent=5 // pred_check
        _
      $region30: #{forward.1} parent=5 // pred_check_branch
        %176 = sbr.rel (%p173) target = $region32
      $region31: #{forward.1} parent=5 // pred_region
        %s177 = ssub.s32 %s12, 1
        %s178 = smul.u32 2, %s21
        %p179 = scmp.lt.s32.totalorder %s178, 3
        %s180 = scalar_select %p179, %s178, 3
        %s181 = smul.addr %s180, 8
        %s182 = scalar_lea.vmem %s0, %s181
        %p183 = pneg %p50
        %p184 = pneg %p47
        %p185 = scmp.lt.s32.totalorder %s22, 0
        %s186 = scalar_select %p185, %s22, 0
        %s187 = smul.addr %s186, 8
        %s188 = scalar_lea.vmem %s1, %s187
        %p189 = pneg %p76
        %p190 = pneg %p73
        %p191 = scmp.lt.s32.totalorder %s22, 0
        %s192 = scalar_select %p191, %s22, 0
        %s193 = scalar_lea.vmem %s2, %s192
        %p194 = pneg %p102
        %p195 = pneg %p99
        %p196 = pneg %p130
        %p197 = pneg %p127
        %s198 = sand.u32 %s117, 1
        %s199 = scalar_lea.sflag [#allocation3], %s198
        %s200 = sand.u32 %s117, 1
        %s201 = smul.addr %s200, 16
        %s202 = scalar_lea.vmem [#allocation2], %s201
        %s203 = smul.u32 2, %s21
        %p204 = scmp.lt.s32.totalorder %s203, 3
        %s205 = scalar_select %p204, %s203, 3
        %s206 = smul.addr %s205, 8
        %s207 = scalar_lea.vmem %s0, %s206
        %s208 = smul.u32 2, %s21
        %p209 = scmp.lt.s32.totalorder %s22, 0
        %s210 = scalar_select %p209, %s22, 0
        %s211 = smul.addr %s210, 8
        %s212 = scalar_lea.vmem %s1, %s211
        %p213 = scmp.lt.s32.totalorder %s22, 0
        %s214 = scalar_select %p213, %s22, 0
        %s215 = scalar_lea.vmem %s2, %s214
        %s216 = smul.u32 2, %s21
        %v217 = vld [vmem:[%s207] sm:$0xff]
        %v218 = vld [vmem:[%s207 + $0x8] sm:$0xff]
        %v219 = vld [vmem:[%s212] sm:$0xff]
        %v220 = vld [vmem:[%s212 + $0x8] sm:$0xff]
        %v221 = vld [vmem:[%s212 + $0x10] sm:$0xff]
        %v222 = vld [vmem:[%s212 + $0x18] sm:$0xff]
        %v223 = vld [vmem:[%s212 + $0x20] sm:$0xff]
        %v224 = vld [vmem:[%s212 + $0x28] sm:$0xff]
        %v225 = vld [vmem:[%s212 + $0x30] sm:$0xff]
        %v226 = vld [vmem:[%s212 + $0x38] sm:$0xff]
        %v227 = vld [vmem:[%s215] sm:$0x1]
        %v229 = vperm.slane %v227, 0
        %vm231 = vcmask 523264
        %v233 = vsel %vm231, %v217, 0
        %v236 = vsel %vm231, %v218, 0
        %238 = vmatpush.msra.mxu0 0.0
        %239 = vmatpush.msra.mxu0 0.0
        %240 = vmatpush.msra.mxu0 0.0
        %241 = vmatpush.msra.mxu0 0.0
        %242 = vmatpush.msra.mxu0 0.0
        %243 = vmatpush.msra.mxu0 0.0
        %244 = vmatpush.msra.mxu0 0.0
        %245 = vmatpush.msra.mxu0 0.0
        %246 = vmatpush.msra.mxu0 %v226
        %247 = vmatpush.msra.mxu0 %v225
        %248 = vmatpush.msra.mxu0 %v224
        %249 = vmatpush.msra.mxu0 %v223
        %250 = vmatpush.msra.mxu0 %v222
        %251 = vmatpush.msra.mxu0 %v221
        %252 = vmatpush.msra.mxu0 %v220
        %253 = vmatpush.msra.mxu0 %v219
        %254 = vmatmul.f32.gmra.mxu0 %v233
        %v255 = vpop.f32.mrf.mxu0
        %v256 = vadd.f32 %v229, %v255
        %257 = vmatmul.f32.gmra.mxu0 %v236
        %v258 = vpop.f32.mrf.mxu0
        %v259 = vadd.f32 %v229, %v258
        %260 = vdwg.mxu0
        %261 = vst [vmem:[%s202] sm:$0xff] %v256
        %262 = vst [vmem:[%s202 + $0x8] sm:$0xff] %v259
        %s263 = sand.u32 %s117, 1
        %s264 = scalar_lea.sflag [#allocation3], %s263
        %s265 = sand.u32 %s117, 1
        %s266 = smul.addr %s265, 16
        %s267 = scalar_lea.vmem [#allocation2], %s266
        // Predicated region
        $region33: #{forward.1} parent=31 // pred_check
          %p268 = pneg %p127
        $region34: #{forward.1} parent=31 // pred_check_branch
          %270 = sbr.rel (%p268) target = $region36
        $region35: #{forward.1} parent=31 // pred_region
          %s271 = smul.u32 2, %s21
          %273 = vsyncadd %s264, 0
          %s274 = sadd.s32 %s22, %s271
          %s275 = smul.addr %s274, 8
          %s276 = scalar_lea.hbm %s3, %s275
          %s277 = sshll.u32 %s267, 4
          %s278 = int_to_ptr.vmem [resolvable:$true] %s277
          %s279 = sshll.u32 %s276, 4
          %s280 = int_to_ptr.hbm [resolvable:$true] %s279
          %285 = dma.vmem_to_hbm [thread:$0]  %s278, 256, %s280, %s264, 128, 128, 8
        $region36: #{forward.1} parent=31 // pred_fallthru
          _
      $region32: #{forward.1} parent=5 // pred_fallthru
        _
      %p286 = scmp.le.s32.totalorder 2, %s12
      // Predicated region
      $region37: #{forward.1} parent=5 // pred_check
        %p287 = pneg %p286
      $region38: #{forward.1} parent=5 // pred_check_branch
        %289 = sbr.rel (%p287) target = $region40
      $region39: #{forward.1} parent=5 // pred_region
        %s290 = ssub.s32 %s12, 2
        // Predicated region
        $region41: #{forward.1} parent=39 // pred_check
          %p291 = pneg %p133
        $region42: #{forward.1} parent=39 // pred_check_branch
          %293 = sbr.rel (%p291) target = $region44
        $region43: #{forward.1} parent=39 // pred_region
          %s294 = sand.u32 %s118, 1
          %s295 = scalar_lea.sflag [#allocation3], %s294
          %s296 = sand.u32 %s118, 1
          %s297 = smul.addr %s296, 16
          %s298 = scalar_lea.vmem [#allocation2], %s297
          %300 = dma.done %s295, 256
        $region44: #{forward.1} parent=39 // pred_fallthru
          _
      $region40: #{forward.1} parent=5 // pred_fallthru
        _
    $region6: #{forward.1} parent=1 // loop_footer
      %s16 = sadd.s32 1, %s12
    $region7: #{forward.1} parent=1 // loop_footer_branch
      %11 = sbr.rel target = $region3
    $region8: #{forward.1} parent=1 // loop_exit
      _
    %301 = vsyncpa [#allocation3], 1
    %s302 = scalar_lea.sflag [#allocation3], 1
    %303 = vsyncpa %s302, 1

</llo_original>
